<compile_context>
chip_gen: v6e
topology: v6e:2x2x1
jax: 0.10.0
libtpu: 0.0.40
codegen_flags: <defaults>
</compile_context>

<pallas_src>
import functools

import jax
import jax.numpy as jnp
from jax.experimental import pallas as pl
from jax.experimental.pallas import tpu as pltpu


def _round_up(v, m):
    return (v + m - 1) // m * m


def _pick_tb(B, max_tb=8):
    """Batch block: fill MXU/vreg sublanes, but keep >=2 parallel blocks
    (v7x has 2 TensorCores; on v5e/v6e the extra blocks are harmless)."""
    tb = min(B, max_tb)
    while B % tb:
        tb -= 1
    if B // tb < 2 and B > 1:
        tb = max(B // 2, 1)
        while B % tb:
            tb -= 1
    return max(tb, 1)


def _weight_spec(block_shape, index_map):
    """Grid-invariant operand: request a single VMEM buffer when supported so
    constant weight blocks don't hold pointless double buffers."""
    if hasattr(pl, "Buffered"):
        try:
            return pl.BlockSpec(block_shape, index_map,
                                pipeline_mode=pl.Buffered(1))
        except TypeError:
            pass
    return pl.BlockSpec(block_shape, index_map)


def _vmem_limit_bytes(TB, TP, K, D, CDp):
    """Derive the scoped-VMEM request from actual (layout-padded) buffer sizes
    plus headroom, instead of a blanket 32 MiB (v7x only has 64 MiB VMEM)."""
    lane = lambda n: _round_up(max(n, 1), 128)
    sub = lambda n, m: _round_up(max(n, 1), m)
    total = 0
    total += 2 * TB * sub(TP, 16) * lane(K) * 2      # patches, double-buffered bf16
    total += 2 * sub(K, 16) * lane(D) * 2            # patch-embed W (2x in case of fallback)
    total += 2 * sub(1, 8) * lane(D) * 4             # patch-embed b
    total += 2 * sub(D, 16) * lane(CDp) * 2          # fc W^T
    total += 2 * sub(1, 8) * lane(CDp) * 4           # fc b
    total += sub(TB, 8) * lane(K) * 4                # accumulator scratch
    total += 2 * sub(TB, 8) * lane(CDp) * 4          # logits output buffers
    total = int(total * 2) + (2 << 20)               # temporaries + compiler headroom
    total = max(total, 4 << 20)
    return _round_up(total, 1 << 20)


def concept_predictor_kernel(patches_ref, pw_ref, pb_ref, fcw_ref, fcb_ref,
                             logits_ref, acc_ref, *, inv_np):
    # patches: [TB, TP, K] bf16      pw:  [K, D]  bf16     pb:  [1, D]   f32
    # fcw:     [D, CDp]    bf16      fcb: [1, CDp] f32
    # logits:  [1, TB, CDp] f32      acc: [TB, K]  f32 (running patch sum)
    #
    # NOTE: the accumulator relies on the patch-tile axis being the innermost
    # (fastest-varying) grid axis with batch outer: grid=(B//TB, NT).
    t = pl.program_id(1)

    @pl.when(t == 0)
    def _():
        acc_ref[...] = jnp.zeros_like(acc_ref)

    # Streaming reduction over this tile's patches (VPU/XLU, f32 accumulate).
    # Zero-padded tail rows of the last tile contribute nothing.
    acc_ref[...] += jnp.sum(patches_ref[...].astype(jnp.float32), axis=1)

    @pl.when(t == pl.num_programs(1) - 1)
    def _():
        # Linearity of the stand-in backbone: mean(patches) @ W == mean(patches @ W),
        # so a single MXU pass on the pooled vectors replaces NP matmuls.
        pooled = (acc_ref[...] * inv_np).astype(pw_ref.dtype)            # [TB, K] bf16
        feats = jnp.dot(pooled, pw_ref[...],
                        preferred_element_type=jnp.float32) + pb_ref[...]  # [TB, D] f32
        # fc head: Dropout (identity at inference) + Linear; sigmoid done in wrapper.
        logits = jnp.dot(feats.astype(fcw_ref.dtype), fcw_ref[...],
                         preferred_element_type=jnp.float32) + fcb_ref[...]  # [TB, CDp]
        logits_ref[0] = logits.astype(logits_ref.dtype)


def concept_predictor_forward(x, patch_w, patch_b, fc_w, fc_b, patch_size,
                              patch_tile=512, batch_block=8):
    """x: [B, C, H, W] (NCHW, like the PyTorch module). Returns (probs, logits)."""
    B, C, H, W = x.shape
    P = patch_size
    NP = (H // P) * (W // P)
    K = P * P * C
    D = patch_w.shape[1]            # backbone num_features (in_dim)
    CD = fc_w.shape[0]              # concept_dim
    CDp = _round_up(CD, 128)        # lane-dense padded concept dim

    TB = _pick_tb(B, batch_block)
    # bf16 sublane packing wants multiples of 16; big tiles amortize step overhead.
    TP = min(_round_up(patch_tile, 16), _round_up(NP, 16))
    NT = -(-NP // TP)
    NPpad = NT * TP

    # --- glue: NCHW image -> non-overlapping patch vectors [B, NPpad, K] bf16.
    # K is left unpadded (block last dim == full array dim is legal), so no
    # doubled-K bf16 copy is materialized.
    # TODO(synk): replace this transpose materialization with BlockSpec
    #             index_map strides over (H/P, W/P).
    xp = x.reshape(B, C, H // P, P, W // P, P)
    xp = jnp.transpose(xp, (0, 2, 4, 3, 5, 1)).reshape(B, NP, K)
    if NPpad != NP:
        xp = jnp.pad(xp, ((0, 0), (0, NPpad - NP), (0, 0)))
    patches = xp.astype(jnp.bfloat16)

    # --- glue: weights (PyTorch Linear: y = x @ W.T + b), bf16 MXU operands.
    pw = patch_w.astype(jnp.bfloat16)                                  # [K, D]
    pb = patch_b.reshape(1, D).astype(jnp.float32)                     # [1, D]
    fcw = jnp.pad(fc_w.T.astype(jnp.float32),
                  ((0, 0), (0, CDp - CD))).astype(jnp.bfloat16)        # [D, CDp]
    fcb = jnp.pad(fc_b.reshape(1, CD).astype(jnp.float32),
                  ((0, 0), (0, CDp - CD)))                             # [1, CDp]

    kernel = functools.partial(concept_predictor_kernel, inv_np=1.0 / NP)

    logits_blocks = pl.pallas_call(
        kernel,
        out_shape=jax.ShapeDtypeStruct((B // TB, TB, CDp), jnp.float32),
        grid=(B // TB, NT),
        in_specs=[
            pl.BlockSpec((TB, TP, K), lambda b, t: (b, t, 0)),   # patch tiles
            _weight_spec((K, D), lambda b, t: (0, 0)),           # patch-embed W
            _weight_spec((1, D), lambda b, t: (0, 0)),           # patch-embed b
            _weight_spec((D, CDp), lambda b, t: (0, 0)),         # fc W^T
            _weight_spec((1, CDp), lambda b, t: (0, 0)),         # fc b
        ],
        out_specs=pl.BlockSpec((1, TB, CDp), lambda b, t: (b, 0, 0)),
        scratch_shapes=[pltpu.VMEM((TB, K), jnp.float32)],       # pooled-patch acc
        compiler_params=pltpu.CompilerParams(
            dimension_semantics=("parallel", "arbitrary"),
            vmem_limit_bytes=_vmem_limit_bytes(TB, TP, K, D, CDp)),
    )(patches, pw, pb, fcw, fcb)

    logits = logits_blocks.reshape(B, CDp)[:, :CD]
    probs = jax.nn.sigmoid(logits)           # cheap XLA epilogue; saves one output
    return probs, logits


if __name__ == "__main__":
    # Small, module-consistent shapes:
    #   image [B=2, C=4, H=32, W=32], patch_size=4 -> 64 patches of dim 64
    #   backbone num_features (in_dim) = 128, concept_dim = 100
    B, C, H, W = 2, 4, 32, 32
    P = 4
    IN_DIM = 128
    CONCEPT_DIM = 100
    K = P * P * C

    key = jax.random.PRNGKey(0)
    kx, kpw, kpb, kfw = jax.random.split(key, 4)

    x = jax.random.normal(kx, (B, C, H, W), dtype=jnp.float32)

    # Backbone patch-embed params (deterministic synthetic init).
    patch_w = jax.random.normal(kpw, (K, IN_DIM), dtype=jnp.float32) * 0.02
    patch_b = jax.random.normal(kpb, (IN_DIM,), dtype=jnp.float32) * 0.02

    # fc head: nn.init.trunc_normal_(weight, std=0.02), zeros_(bias)
    fc_w = (jax.random.truncated_normal(kfw, -2.0, 2.0,
                                        (CONCEPT_DIM, IN_DIM),
                                        dtype=jnp.float32) * 0.02)
    fc_b = jnp.zeros((CONCEPT_DIM,), dtype=jnp.float32)

    # patch_tile=16 -> 4 patch tiles along the reduction axis (exercises the
    # streaming accumulator); batch blocking keeps 2 parallel blocks (B=2).
    probs, logits = concept_predictor_forward(x, patch_w, patch_b,
                                              fc_w, fc_b, patch_size=P,
                                              patch_tile=16)
    jax.block_until_ready((probs, logits))

    # Sanity check against a plain-JAX f32 reference of the same math
    # (bf16 MXU/stream operands => loosened tolerance).
    NP = (H // P) * (W // P)
    xp = x.reshape(B, C, H // P, P, W // P, P)
    xp = jnp.transpose(xp, (0, 2, 4, 3, 5, 1)).reshape(B, NP, K)
    feats_ref = jnp.mean(xp @ patch_w + patch_b, axis=1)
    logits_ref = feats_ref @ fc_w.T + fc_b
    probs_ref = jax.nn.sigmoid(logits_ref)

    assert probs.shape == (B, CONCEPT_DIM) and logits.shape == (B, CONCEPT_DIM)
    assert jnp.allclose(logits, logits_ref, atol=1e-2), "logits mismatch"
    assert jnp.allclose(probs, probs_ref, atol=1e-2), "probs mismatch"

    print("KERNEL_OK")
</pallas_src>

<mosaic_0001>
module attributes {stable_mosaic.version = 11 : i64} {
  func.func @concept_predictor_kernel(%arg0: i32, %arg1: i32, %arg2: memref<1x16x64xbf16, #tpu.memory_space<vmem>>, %arg3: memref<64x128xbf16, #tpu.memory_space<vmem>>, %arg4: memref<1x128xf32, #tpu.memory_space<vmem>>, %arg5: memref<128x128xbf16, #tpu.memory_space<vmem>>, %arg6: memref<1x128xf32, #tpu.memory_space<vmem>>, %arg7: memref<1x1x128xf32, #tpu.memory_space<vmem>>, %arg8: memref<1x64xf32, #tpu.memory_space<vmem>>) attributes {dimension_semantics = [#tpu.dimension_semantics<parallel>, #tpu.dimension_semantics<arbitrary>], iteration_bounds = array<i64: 2, 4>, scalar_prefetch = 0 : i64, scratch_operands = 1 : i64, tpu.core_type = #tpu.core_type<tc>, window_params = [{transform_indices = @transform_0, window_bounds = array<i64: 1, 16, 64>}, {pipeline_mode = #tpu.pipeline_mode<synchronous>, transform_indices = @transform_1, window_bounds = array<i64: 64, 128>}, {pipeline_mode = #tpu.pipeline_mode<synchronous>, transform_indices = @transform_2, window_bounds = array<i64: 1, 128>}, {pipeline_mode = #tpu.pipeline_mode<synchronous>, transform_indices = @transform_3, window_bounds = array<i64: 128, 128>}, {pipeline_mode = #tpu.pipeline_mode<synchronous>, transform_indices = @transform_4, window_bounds = array<i64: 1, 128>}, {transform_indices = @transform_5, window_bounds = array<i64: 1, 1, 128>}]} {
    %c0_i32 = arith.constant 0 : i32
    %0 = arith.cmpi eq, %arg1, %c0_i32 : i32
    %1 = arith.extui %0 : i1 to i32
    %c0_i32_0 = arith.constant 0 : i32
    %2 = arith.cmpi ne, %1, %c0_i32_0 : i32
    scf.if %2 {
      %cst_8 = arith.constant 0.000000e+00 : f32
      %12 = vector.broadcast %cst_8 : f32 to vector<1x64xf32>
      %c0_9 = arith.constant 0 : index
      %c0_10 = arith.constant 0 : index
      %13 = vector.load %arg8[%c0_9, %c0_10] : memref<1x64xf32, #tpu.memory_space<vmem>>, vector<1x64xf32>
      tpu.vector_store %arg8[%c0_9, %c0_10], %12 {strides = array<i32>} : memref<1x64xf32, #tpu.memory_space<vmem>>, vector<1x64xf32>,
    } else {
    }
    %c0 = arith.constant 0 : index
    %c0_1 = arith.constant 0 : index
    %3 = vector.load %arg8[%c0, %c0_1] : memref<1x64xf32, #tpu.memory_space<vmem>>, vector<1x64xf32>
    %c0_2 = arith.constant 0 : index
    %c0_3 = arith.constant 0 : index
    %c0_4 = arith.constant 0 : index
    %4 = vector.load %arg2[%c0_2, %c0_3, %c0_4] : memref<1x16x64xbf16, #tpu.memory_space<vmem>>, vector<1x16x64xbf16>
    %5 = arith.extf %4 : vector<1x16x64xbf16> to vector<1x16x64xf32>
    %cst = arith.constant dense<0.000000e+00> : vector<1x64xf32>
    %6 = vector.multi_reduction <add>, %5, %cst [1] : vector<1x16x64xf32> to vector<1x64xf32>
    %7 = arith.addf %3, %6 : vector<1x64xf32>
    %c0_5 = arith.constant 0 : index
    %c0_6 = arith.constant 0 : index
    %8 = vector.load %arg8[%c0_5, %c0_6] : memref<1x64xf32, #tpu.memory_space<vmem>>, vector<1x64xf32>
    tpu.vector_store %arg8[%c0_5, %c0_6], %7 {strides = array<i32>} : memref<1x64xf32, #tpu.memory_space<vmem>>, vector<1x64xf32>,
    %c3_i32 = arith.constant 3 : i32
    %9 = arith.cmpi eq, %arg1, %c3_i32 : i32
    %10 = arith.extui %9 : i1 to i32
    %c0_i32_7 = arith.constant 0 : i32
    %11 = arith.cmpi ne, %10, %c0_i32_7 : i32
    scf.if %11 {
      %c0_8 = arith.constant 0 : index
      %c0_9 = arith.constant 0 : index
      %12 = vector.load %arg8[%c0_8, %c0_9] : memref<1x64xf32, #tpu.memory_space<vmem>>, vector<1x64xf32>
      %cst_10 = arith.constant 1.562500e-02 : f32
      %13 = vector.broadcast %cst_10 : f32 to vector<1x64xf32>
      %14 = arith.mulf %12, %13 : vector<1x64xf32>
      %15 = arith.truncf %14 : vector<1x64xf32> to vector<1x64xbf16>
      %c0_11 = arith.constant 0 : index
      %c0_12 = arith.constant 0 : index
      %16 = vector.load %arg3[%c0_11, %c0_12] : memref<64x128xbf16, #tpu.memory_space<vmem>>, vector<64x128xbf16>
      %cst_13 = arith.constant dense<0.000000e+00> : vector<1x128xf32>
      %17 = tpu.matmul %15, %16, %cst_13 {dimension_numbers = #tpu.dot_dimension_numbers<[1], [0], [0], [1], [0, 0, 1, 1], [], []>} : vector<1x64xbf16>, vector<64x128xbf16>, vector<1x128xf32> -> vector<1x128xf32>
      %c0_14 = arith.constant 0 : index
      %c0_15 = arith.constant 0 : index
      %18 = vector.load %arg4[%c0_14, %c0_15] : memref<1x128xf32, #tpu.memory_space<vmem>>, vector<1x128xf32>
      %19 = arith.addf %17, %18 : vector<1x128xf32>
      %20 = arith.truncf %19 : vector<1x128xf32> to vector<1x128xbf16>
      %c0_16 = arith.constant 0 : index
      %c0_17 = arith.constant 0 : index
      %21 = vector.load %arg5[%c0_16, %c0_17] : memref<128x128xbf16, #tpu.memory_space<vmem>>, vector<128x128xbf16>
      %cst_18 = arith.constant dense<0.000000e+00> : vector<1x128xf32>
      %22 = tpu.matmul %20, %21, %cst_18 {dimension_numbers = #tpu.dot_dimension_numbers<[1], [0], [0], [1], [0, 0, 1, 1], [], []>} : vector<1x128xbf16>, vector<128x128xbf16>, vector<1x128xf32> -> vector<1x128xf32>
      %c0_19 = arith.constant 0 : index
      %c0_20 = arith.constant 0 : index
      %23 = vector.load %arg6[%c0_19, %c0_20] : memref<1x128xf32, #tpu.memory_space<vmem>>, vector<1x128xf32>
      %24 = arith.addf %22, %23 : vector<1x128xf32>
      %c0_21 = arith.constant 0 : index
      %c0_22 = arith.constant 0 : index
      %c0_23 = arith.constant 0 : index
      %25 = vector.load %arg7[%c0_21, %c0_22, %c0_23] : memref<1x1x128xf32, #tpu.memory_space<vmem>>, vector<1x1x128xf32>
      %26 = vector.shape_cast %25 : vector<1x1x128xf32> to vector<1x128xf32>
      %27 = vector.shape_cast %24 : vector<1x128xf32> to vector<1x1x128xf32>
      tpu.vector_store %arg7[%c0_21, %c0_22, %c0_23], %27 {strides = array<i32>} : memref<1x1x128xf32, #tpu.memory_space<vmem>>, vector<1x1x128xf32>,
    } else {
    }
    return
  }
  func.func @transform_0(%arg0: i32, %arg1: i32) -> (i32, i32, i32) {
    %c0_i32 = arith.constant 0 : i32
    %c0_i32_0 = arith.constant 0 : i32
    return %arg0, %arg1, %c0_i32 : i32, i32, i32
  }
  func.func @transform_1(%arg0: i32, %arg1: i32) -> (i32, i32) {
    %c0_i32 = arith.constant 0 : i32
    %c0_i32_0 = arith.constant 0 : i32
    %c0_i32_1 = arith.constant 0 : i32
    return %c0_i32, %c0_i32_0 : i32, i32
  }
  func.func @transform_2(%arg0: i32, %arg1: i32) -> (i32, i32) {
    %c0_i32 = arith.constant 0 : i32
    %c0_i32_0 = arith.constant 0 : i32
    %c0_i32_1 = arith.constant 0 : i32
    return %c0_i32, %c0_i32_0 : i32, i32
  }
  func.func @transform_3(%arg0: i32, %arg1: i32) -> (i32, i32) {
    %c0_i32 = arith.constant 0 : i32
    %c0_i32_0 = arith.constant 0 : i32
    %c0_i32_1 = arith.constant 0 : i32
    return %c0_i32, %c0_i32_0 : i32, i32
  }
  func.func @transform_4(%arg0: i32, %arg1: i32) -> (i32, i32) {
    %c0_i32 = arith.constant 0 : i32
    %c0_i32_0 = arith.constant 0 : i32
    %c0_i32_1 = arith.constant 0 : i32
    return %c0_i32, %c0_i32_0 : i32, i32
  }
  func.func @transform_5(%arg0: i32, %arg1: i32) -> (i32, i32, i32) {
    %c0_i32 = arith.constant 0 : i32
    %c0_i32_0 = arith.constant 0 : i32
    %c0_i32_1 = arith.constant 0 : i32
    return %arg0, %c0_i32, %c0_i32_0 : i32, i32, i32
  }
}

</mosaic_0001>

<llo_original>
// kernel: tpu_custom_call.1
$region0: #{tpu_custom_call.1}
  #allocation0 [shape = 'u32[]', space=smem, size = 0x4, offset = 0x4, fixed_abs, tag = 'smem constant byte address 0x4 - core index']
  #allocation1 [shape = 'u32[144,128]{1,0:T(1,128)}', space=vmem, size = 0x12000, scoped, tag = 'internal scratch']
  #allocation2 [shape = 'f32[1,64]{1,0:T(1,128)}', space=vmem, size = 0x200, scoped, tag = 'scratch operand']
  %s0 = inlined_call_operand.hbm [shape: bf16[2,64,64], index: 0, kind: input, shape index: {}]
  %s1 = inlined_call_operand.hbm [shape: bf16[64,128], index: 1, kind: input, shape index: {}]
  %s2 = inlined_call_operand.vmem [shape: f32[1,128], index: 2, kind: input, shape index: {}]
  %s3 = inlined_call_operand.hbm [shape: bf16[128,128], index: 3, kind: input, shape index: {}]
  %s4 = inlined_call_operand.vmem [shape: f32[1,128], index: 4, kind: input, shape index: {}]
  %s5 = inlined_call_operand.hbm [shape: f32[2,1,128], index: 5, kind: output, shape index: {}]
  %s6 = sld [smem:[#allocation0]]
  $region73: #{tpu_custom_call.1} parent=0
    _
  %s8 = ssub.s32 1, %s6
  %s9 = scalar_select 0, %s8, %s6
  $region1: #{tpu_custom_call.1} parent=0
    #allocation3 [shape = 'u8[8192]{0}', space=vmem, size = 0x2000, scoped, tag = 'input window, operand 0']
    #allocation4 [shape = 's32[2]{0}', space=sflag, size = 0x8, scoped, tag = 'scoped memory for tpu_custom_call.1']
    #allocation5 [shape = 's32[2]{0}', space=sflag, size = 0x8, scoped, tag = 'scoped memory for tpu_custom_call.1']
    #allocation6 [shape = 'u8[16384]{0}', space=vmem, size = 0x4000, scoped, tag = 'input window, operand 1, single buffered']
    #allocation7 [shape = 's32[1]{0}', space=sflag, size = 0x4, scoped, tag = 'scoped memory for tpu_custom_call.1']
    #allocation8 [shape = 'u8[32768]{0}', space=vmem, size = 0x8000, scoped, tag = 'input window, operand 3, single buffered']
    #allocation9 [shape = 'u8[1024]{0}', space=vmem, size = 0x400, scoped, tag = 'output window, operand 0']
    %10 = vsyncpa [#allocation4], 0
    %s11 = scalar_lea.sflag [#allocation4], 1
    %12 = vsyncpa %s11, 0
    %13 = vsyncpa [#allocation7], 0
    %14 = vsyncpa [#allocation5], 0
    %s15 = scalar_lea.sflag [#allocation5], 1
    %16 = vsyncpa %s15, 0
    loop: start=0, step=1, limit=10
    $region2: #{tpu_custom_call.1} parent=1 // loop_pre_header
      _
    $region3: #{tpu_custom_call.1} parent=1 // loop_header
      %s18 = sphi 0, %s22
      %p19 = scmp.ge.s32.totalorder %s18, 10
      %s25 = sphi 0, %s37
      %s26 = sphi 0, %s33
      %s27 = sphi 0, %s25
      %s28 = sphi 0, %s26
      %s29 = sphi 0, %s27
      %s30 = sphi 0, %s28
      %s42 = sphi 0, %s44
      %s45 = sphi 0, %s42
      %s46 = sphi 0, %s45
      %s62 = sphi 0, %s46
      %s66 = sphi 0, %s66
      %s68 = sphi 0, %s66
      %s69 = sphi 0, %s68
      %s83 = sphi 0, %s69
      %s87 = sphi 0, %s87
      %s89 = sphi 0, %s87
      %s90 = sphi 0, %s89
      %s104 = sphi 0, %s90
      %s108 = sphi 0, %s108
      %s110 = sphi 0, %s108
      %s111 = sphi 0, %s110
      %s125 = sphi 0, %s111
      %s129 = sphi 0, %s129
      %s131 = sphi 0, %s129
      %s132 = sphi 0, %s131
      %s146 = sphi 0, %s132
      %s152 = sphi 0, %s154
      %s155 = sphi 0, %s152
      %s156 = sphi 0, %s155
      %s172 = sphi 0, %s156
    $region4: #{tpu_custom_call.1} parent=1 // loop_header_branch
      %21 = sbr.rel (%p19) target = $region8
    $region5: #{tpu_custom_call.1} parent=1 // loop_body
      %s23 = ssub.s32 %s18, 1
      %s24 = ssub.s32 %s18, 2
      %s31 = sadd.s32 1, %s26
      %p32 = scmp.ge.s32.totalorder %s31, 4
      %s33 = scalar_select %p32, 0, %s31
      %s34 = sadd.s32 1, %s25
      %s35 = scalar_select %p32, %s34, %s25
      %p36 = scmp.ge.s32.totalorder %s35, 2
      %s37 = scalar_select %p36, 0, %s35
      %s38 = ssub.s32 %s25, %s37
      %s39 = ssub.s32 %s26, %s33
      %s40 = sor.u32 %s38, %s39
      %p41 = scmp.eq.s32.totalorder %s40, 0
      %s43 = sadd.s32 %s42, 1
      %s44 = scalar_select %p41, %s42, %s43
      %p47 = pneg %p41
      %p48 = scmp.eq.s32.totalorder %s18, 7
      %p49 = por %p47, %p48
      %p50 = scmp.ne.s32.totalorder %s42, %s45
      %p51 = scmp.eq.s32.totalorder %s18, 0
      %p52 = por %p50, %p51
      %p53 = scmp.ne.s32.totalorder %s42, %s45
      %p54 = scmp.eq.s32.totalorder %s23, 7
      %p55 = por %p53, %p54
      %p56 = scmp.ne.s32.totalorder %s45, %s46
      %p57 = scmp.eq.s32.totalorder %s23, 0
      %p58 = por %p56, %p57
      %p59 = scmp.ne.s32.totalorder %s45, %s46
      %p60 = scmp.eq.s32.totalorder %s24, 7
      %p61 = por %p59, %p60
      %p63 = scmp.ne.s32.totalorder %s46, %s62
      %p64 = scmp.eq.s32.totalorder %s24, 0
      %p65 = por %p63, %p64
      %s67 = sadd.s32 %s66, 1
      %p70 = scmp.eq.s32.totalorder %s18, 7
      %p71 = scmp.ne.s32.totalorder %s66, %s68
      %p72 = scmp.eq.s32.totalorder %s18, 0
      %p73 = por %p71, %p72
      %p74 = scmp.ne.s32.totalorder %s66, %s68
      %p75 = scmp.eq.s32.totalorder %s23, 7
      %p76 = por %p74, %p75
      %p77 = scmp.ne.s32.totalorder %s68, %s69
      %p78 = scmp.eq.s32.totalorder %s23, 0
      %p79 = por %p77, %p78
      %p80 = scmp.ne.s32.totalorder %s68, %s69
      %p81 = scmp.eq.s32.totalorder %s24, 7
      %p82 = por %p80, %p81
      %p84 = scmp.ne.s32.totalorder %s69, %s83
      %p85 = scmp.eq.s32.totalorder %s24, 0
      %p86 = por %p84, %p85
      %s88 = sadd.s32 %s87, 1
      %p91 = scmp.eq.s32.totalorder %s18, 7
      %p92 = scmp.ne.s32.totalorder %s87, %s89
      %p93 = scmp.eq.s32.totalorder %s18, 0
      %p94 = por %p92, %p93
      %p95 = scmp.ne.s32.totalorder %s87, %s89
      %p96 = scmp.eq.s32.totalorder %s23, 7
      %p97 = por %p95, %p96
      %p98 = scmp.ne.s32.totalorder %s89, %s90
      %p99 = scmp.eq.s32.totalorder %s23, 0
      %p100 = por %p98, %p99
      %p101 = scmp.ne.s32.totalorder %s89, %s90
      %p102 = scmp.eq.s32.totalorder %s24, 7
      %p103 = por %p101, %p102
      %p105 = scmp.ne.s32.totalorder %s90, %s104
      %p106 = scmp.eq.s32.totalorder %s24, 0
      %p107 = por %p105, %p106
      %s109 = sadd.s32 %s108, 1
      %p112 = scmp.eq.s32.totalorder %s18, 7
      %p113 = scmp.ne.s32.totalorder %s108, %s110
      %p114 = scmp.eq.s32.totalorder %s18, 0
      %p115 = por %p113, %p114
      %p116 = scmp.ne.s32.totalorder %s108, %s110
      %p117 = scmp.eq.s32.totalorder %s23, 7
      %p118 = por %p116, %p117
      %p119 = scmp.ne.s32.totalorder %s110, %s111
      %p120 = scmp.eq.s32.totalorder %s23, 0
      %p121 = por %p119, %p120
      %p122 = scmp.ne.s32.totalorder %s110, %s111
      %p123 = scmp.eq.s32.totalorder %s24, 7
      %p124 = por %p122, %p123
      %p126 = scmp.ne.s32.totalorder %s111, %s125
      %p127 = scmp.eq.s32.totalorder %s24, 0
      %p128 = por %p126, %p127
      %s130 = sadd.s32 %s129, 1
      %p133 = scmp.eq.s32.totalorder %s18, 7
      %p134 = scmp.ne.s32.totalorder %s129, %s131
      %p135 = scmp.eq.s32.totalorder %s18, 0
      %p136 = por %p134, %p135
      %p137 = scmp.ne.s32.totalorder %s129, %s131
      %p138 = scmp.eq.s32.totalorder %s23, 7
      %p139 = por %p137, %p138
      %p140 = scmp.ne.s32.totalorder %s131, %s132
      %p141 = scmp.eq.s32.totalorder %s23, 0
      %p142 = por %p140, %p141
      %p143 = scmp.ne.s32.totalorder %s131, %s132
      %p144 = scmp.eq.s32.totalorder %s24, 7
      %p145 = por %p143, %p144
      %p147 = scmp.ne.s32.totalorder %s132, %s146
      %p148 = scmp.eq.s32.totalorder %s24, 0
      %p149 = por %p147, %p148
      %s150 = ssub.s32 %s25, %s37
      %p151 = scmp.eq.s32.totalorder %s150, 0
      %s153 = sadd.s32 %s152, 1
      %s154 = scalar_select %p151, %s152, %s153
      %p157 = pneg %p151
      %p158 = scmp.eq.s32.totalorder %s18, 7
      %p159 = por %p157, %p158
      %p160 = scmp.ne.s32.totalorder %s152, %s155
      %p161 = scmp.eq.s32.totalorder %s18, 0
      %p162 = por %p160, %p161
      %p163 = scmp.ne.s32.totalorder %s152, %s155
      %p164 = scmp.eq.s32.totalorder %s23, 7
      %p165 = por %p163, %p164
      %p166 = scmp.ne.s32.totalorder %s155, %s156
      %p167 = scmp.eq.s32.totalorder %s23, 0
      %p168 = por %p166, %p167
      %p169 = scmp.ne.s32.totalorder %s155, %s156
      %p170 = scmp.eq.s32.totalorder %s24, 7
      %p171 = por %p169, %p170
      %p173 = scmp.ne.s32.totalorder %s156, %s172
      %p174 = scmp.eq.s32.totalorder %s24, 0
      %p175 = por %p173, %p174
      %p176 = scmp.le.s32.totalorder 1, %s18
      %p177 = scmp.lt.s32.totalorder %s18, 9
      %p178 = pnand %p176, %p177
      %p179 = pneg %p178
      // Predicated region
      $region9: #{tpu_custom_call.1} parent=5 // pred_check
        _
      $region10: #{tpu_custom_call.1} parent=5 // pred_check_branch
        %181 = sbr.rel (%p178) target = $region12
      $region11: #{tpu_custom_call.1} parent=5 // pred_region
        %s182 = ssub.s32 %s18, 1
        // Predicated region
        $region13: #{tpu_custom_call.1} parent=11 // pred_check
          %p183 = pneg %p79
        $region14: #{tpu_custom_call.1} parent=11 // pred_check_branch
          %185 = sbr.rel (%p183) target = $region16
        $region15: #{tpu_custom_call.1} parent=11 // pred_region
          %s187 = ssub.s32 512, 512
          %188 = vsyncadd [#allocation7], %s187
          %s189 = sshll.u32 [#allocation6], 4
          %s190 = int_to_ptr.vmem [resolvable:$true] %s189
          %195 = dma.hbm_to_vmem [thread:$0]  %s1, 512, %s190, [#allocation7], 64, 64, 4
        $region16: #{tpu_custom_call.1} parent=11 // pred_fallthru
          _
        // Predicated region
        $region17: #{tpu_custom_call.1} parent=11 // pred_check
          %p196 = pneg %p100
        $region18: #{tpu_custom_call.1} parent=11 // pred_check_branch
          %198 = sbr.rel (%p196) target = $region20
        $region19: #{tpu_custom_call.1} parent=11 // pred_region
          _
        $region20: #{tpu_custom_call.1} parent=11 // pred_fallthru
          _
        // Predicated region
        $region21: #{tpu_custom_call.1} parent=11 // pred_check
          %p199 = pneg %p121
        $region22: #{tpu_custom_call.1} parent=11 // pred_check_branch
          %201 = sbr.rel (%p199) target = $region24
        $region23: #{tpu_custom_call.1} parent=11 // pred_region
          %s203 = ssub.s32 1024, 1024
          %204 = vsyncadd [#allocation7], %s203
          %s205 = sshll.u32 [#allocation8], 4
          %s206 = int_to_ptr.vmem [resolvable:$true] %s205
          %211 = dma.hbm_to_vmem [thread:$0]  %s3, 1024, %s206, [#allocation7], 64, 64, 4
        $region24: #{tpu_custom_call.1} parent=11 // pred_fallthru
          _
        // Predicated region
        $region25: #{tpu_custom_call.1} parent=11 // pred_check
          %p212 = pneg %p142
        $region26: #{tpu_custom_call.1} parent=11 // pred_check_branch
          %214 = sbr.rel (%p212) target = $region28
        $region27: #{tpu_custom_call.1} parent=11 // pred_region
          _
        $region28: #{tpu_custom_call.1} parent=11 // pred_fallthru
          _
      $region12: #{tpu_custom_call.1} parent=5 // pred_fallthru
        _
      %p215 = scmp.lt.s32.totalorder %s18, 8
      // Predicated region
      $region29: #{tpu_custom_call.1} parent=5 // pred_check
        %p216 = pneg %p215
      $region30: #{tpu_custom_call.1} parent=5 // pred_check_branch
        %218 = sbr.rel (%p216) target = $region32
      $region31: #{tpu_custom_call.1} parent=5 // pred_region
        // Predicated region
        $region33: #{tpu_custom_call.1} parent=31 // pred_check
          %p219 = pneg %p52
        $region34: #{tpu_custom_call.1} parent=31 // pred_check_branch
          %221 = sbr.rel (%p219) target = $region36
        $region35: #{tpu_custom_call.1} parent=31 // pred_region
          %s222 = sand.u32 %s42, 1
          %s223 = scalar_lea.sflag [#allocation4], %s222
          %s224 = sand.u32 %s42, 1
          %s225 = smul.addr %s224, 8
          %s226 = scalar_lea.vmem [#allocation3], %s225
          %s227 = smul.u32 2, %s26
          %s229 = ssub.s32 128, 128
          %230 = vsyncadd %s223, %s229
          %s231 = smul.addr %s25, 8
          %s232 = sadd.s32 %s227, %s231
          %s233 = smul.addr %s232, 64
          %s234 = scalar_lea.hbm %s0, %s233
          %s235 = sshll.u32 %s226, 4
          %s236 = int_to_ptr.vmem [resolvable:$true] %s235
          %241 = dma.hbm_to_vmem [thread:$0]  %s234, 128, %s236, %s223, 64, 64, 4
        $region36: #{tpu_custom_call.1} parent=31 // pred_fallthru
          _
      $region32: #{tpu_custom_call.1} parent=5 // pred_fallthru
        _
      %p242 = scmp.le.s32.totalorder 1, %s18
      %p243 = scmp.lt.s32.totalorder %s18, 9
      %p244 = pnand %p242, %p243
      %p245 = pneg %p244
      // Predicated region
      $region37: #{tpu_custom_call.1} parent=5 // pred_check
        _
      $region38: #{tpu_custom_call.1} parent=5 // pred_check_branch
        %247 = sbr.rel (%p244) target = $region40
      $region39: #{tpu_custom_call.1} parent=5 // pred_region
        %s248 = ssub.s32 %s18, 1
        %s249 = sand.u32 %s45, 1
        %s250 = scalar_lea.sflag [#allocation4], %s249
        %s251 = sand.u32 %s45, 1
        %s252 = smul.addr %s251, 8
        %s253 = scalar_lea.vmem [#allocation3], %s252
        // Predicated region
        $region41: #{tpu_custom_call.1} parent=39 // pred_check
          %p254 = pneg %p58
        $region42: #{tpu_custom_call.1} parent=39 // pred_check_branch
          %256 = sbr.rel (%p254) target = $region44
        $region43: #{tpu_custom_call.1} parent=39 // pred_region
          %257 = dma.done %s250, 128
        $region44: #{tpu_custom_call.1} parent=39 // pred_fallthru
          _
        // Predicated region
        $region45: #{tpu_custom_call.1} parent=39 // pred_check
          %p258 = pneg %p79
        $region46: #{tpu_custom_call.1} parent=39 // pred_check_branch
          %260 = sbr.rel (%p258) target = $region48
        $region47: #{tpu_custom_call.1} parent=39 // pred_region
          %261 = dma.done [#allocation7], 512
        $region48: #{tpu_custom_call.1} parent=39 // pred_fallthru
          _
        // Predicated region
        $region49: #{tpu_custom_call.1} parent=39 // pred_check
          %p262 = pneg %p121
        $region50: #{tpu_custom_call.1} parent=39 // pred_check_branch
          %264 = sbr.rel (%p262) target = $region52
        $region51: #{tpu_custom_call.1} parent=39 // pred_region
          %265 = dma.done [#allocation7], 1024
        $region52: #{tpu_custom_call.1} parent=39 // pred_fallthru
          _
        %s266 = sand.u32 %s45, 1
        %s267 = scalar_lea.sflag [#allocation4], %s266
        %s268 = sand.u32 %s45, 1
        %s269 = smul.addr %s268, 8
        %s270 = scalar_lea.vmem [#allocation3], %s269
        %p271 = pneg %p58
        %p272 = pneg %p55
        %p273 = pneg %p79
        %p274 = pneg %p76
        %p275 = pneg %p100
        %p276 = pneg %p97
        %p277 = pneg %p121
        %p278 = pneg %p118
        %p279 = pneg %p142
        %p280 = pneg %p139
        %p281 = pneg %p168
        %p282 = pneg %p165
        %s283 = sand.u32 %s155, 1
        %s284 = scalar_lea.sflag [#allocation5], %s283
        %s285 = sand.u32 %s155, 1
        %s286 = scalar_lea.vmem [#allocation9], %s285
        %s287 = smul.u32 2, %s28
        %p289 = scmp.eq.s32.totalorder %s28, 0
        // Predicated region
        $region53: #{tpu_custom_call.1} parent=39 // pred_check
          %p290 = pneg %p289
        $region54: #{tpu_custom_call.1} parent=39 // pred_check_branch
          %292 = sbr.rel (%p290) target = $region56
        $region55: #{tpu_custom_call.1} parent=39 // pred_region
          %vm293 = vcmask 516096
          %294 = vst.msk [vmem:[#allocation2] sm:$0x1] %vm293, 0.0
        $region56: #{tpu_custom_call.1} parent=39 // pred_fallthru
          _
        %v295 = vld [vmem:[#allocation2] sm:$0x1]
        %v296 = vld [vmem:[%s253] sm:$0xf]
        %v297 = vld [vmem:[%s253 + $0x4] sm:$0xf]
        %v298 = vunpack.c.l.bf16 %v296
        %v299 = vunpack.c.l.bf16 %v297
        %vm300 = vcmask 523264
        %v301 = vsel %vm300, %v298, 0.0
        %v302 = vsel %vm300, %v299, 0.0
        %v303 = vadd.f32 %v301, %v302
        %v304 = vrot.slane %v303, 4
        %v305 = vadd.f32 %v303, %v304
        %v306 = vrot.slane %v305, 2
        %v307 = vadd.f32 %v305, %v306
        %v308 = vrot.slane %v307, 1
        %v309 = vadd.f32 %v307, %v308
        %v310 = vadd.f32 %v295, %v309
        %vm311 = vcmask 516096
        %312 = vst.msk [vmem:[#allocation2] sm:$0x1] %vm311, %v310
        %p313 = scmp.eq.s32.totalorder %s28, 3
        // Predicated region
        $region57: #{tpu_custom_call.1} parent=39 // pred_check
          %p314 = pneg %p313
        $region58: #{tpu_custom_call.1} parent=39 // pred_check_branch
          %316 = sbr.rel (%p314) target = $region60
        $region59: #{tpu_custom_call.1} parent=39 // pred_region
          %v317 = vld [vmem:[#allocation2] sm:$0x1]
          %v318 = vmul.f32 %v317, 0.015625
          %v319 = vpack.c.bf16 %v318, %v318
          %v320 = vld [vmem:[#allocation6] sm:$0xf]
          %v321 = vld [vmem:[#allocation6 + $0x4] sm:$0xf]
          %v322 = vld [vmem:[#allocation6 + $0x8] sm:$0xf]
          %v323 = vld [vmem:[#allocation6 + $0xc] sm:$0xf]
          %v324 = vld [vmem:[#allocation6 + $0x10] sm:$0xf]
          %v325 = vld [vmem:[#allocation6 + $0x14] sm:$0xf]
          %v326 = vld [vmem:[#allocation6 + $0x18] sm:$0xf]
          %v327 = vld [vmem:[#allocation6 + $0x1c] sm:$0xf]
          %v328 = vld [vmem:[%s2] sm:$0x1]
          %v337 = vunpack.c.l.b16 %v320
          %v338 = vunpack.c.l.b16 %v321
          %v339 = vunpack.c.l.b16 %v322
          %v340 = vunpack.c.l.b16 %v323
          %v341 = vunpack.c.l.b16 %v324
          %v342 = vunpack.c.l.b16 %v325
          %v343 = vunpack.c.l.b16 %v326
          %v344 = vunpack.c.l.b16 %v327
          %v345 = vpack.c.b16 %v338, %v337
          %v346 = vpack.c.b16 %v340, %v339
          %v347 = vpack.c.b16 %v342, %v341
          %v348 = vpack.c.b16 %v344, %v343
          %v354 = vsel %vm300, %v319, 0
          %356 = vmatprep.subr.bf16.mxu0 0
          %357 = vmatpush1.bf16.msra.mxu0 0
          %358 = vmatprep.subr.bf16.mxu0 0
          %359 = vmatpush1.bf16.msra.mxu0 0
          %360 = vmatprep.subr.bf16.mxu0 0
          %361 = vmatpush1.bf16.msra.mxu0 0
          %362 = vmatprep.subr.bf16.mxu0 0
          %363 = vmatpush1.bf16.msra.mxu0 0
          %364 = vmatprep.subr.bf16.mxu0 0
          %365 = vmatpush1.bf16.msra.mxu0 %v348
          %366 = vmatprep.subr.bf16.mxu0 0
          %367 = vmatpush1.bf16.msra.mxu0 %v347
          %368 = vmatprep.subr.bf16.mxu0 0
          %369 = vmatpush1.bf16.msra.mxu0 %v346
          %370 = vmatprep.subr.bf16.mxu0 0
          %371 = vmatpush1.bf16.msra.mxu0 %v345
          %372 = vmatprep.subr.bf16.mxu0 0
          %373 = vmatpush2.bf16.msra.mxu0 0
          %374 = vmatprep.subr.bf16.mxu0 0
          %375 = vmatpush2.bf16.msra.mxu0 0
          %376 = vmatprep.subr.bf16.mxu0 0
          %377 = vmatpush2.bf16.msra.mxu0 0
          %378 = vmatprep.subr.bf16.mxu0 0
          %379 = vmatpush2.bf16.msra.mxu0 0
          %380 = vmatprep.subr.bf16.mxu0 0
          %381 = vmatpush2.bf16.msra.mxu0 0
          %382 = vmatprep.subr.bf16.mxu0 0
          %383 = vmatpush2.bf16.msra.mxu0 0
          %384 = vmatprep.subr.bf16.mxu0 0
          %385 = vmatpush2.bf16.msra.mxu0 0
          %386 = vmatprep.subr.bf16.mxu0 0
          %387 = vmatpush2.bf16.msra.mxu0 0
          %388 = vmatprep.mubr.bf16.mxu0 0
          %389 = vmatmul.mubr.bf16.gmra.mxu0 %v354
          %v390 = vpop.f32.mrf.mxu0
          %v391 = vadd.f32 %v328, %v390
          %v392 = vpop.f32.mrf.mxu0
          %v393 = vpop.f32.mrf.mxu0
          %v394 = vpop.f32.mrf.mxu0
          %395 = vdwg.mxu0
          %v396 = vpack.c.bf16 %v391, %v391
          %v397 = vld [vmem:[#allocation8] sm:$0xf]
          %v398 = vld [vmem:[#allocation8 + $0x4] sm:$0xf]
          %v399 = vld [vmem:[#allocation8 + $0x8] sm:$0xf]
          %v400 = vld [vmem:[#allocation8 + $0xc] sm:$0xf]
          %v401 = vld [vmem:[#allocation8 + $0x10] sm:$0xf]
          %v402 = vld [vmem:[#allocation8 + $0x14] sm:$0xf]
          %v403 = vld [vmem:[#allocation8 + $0x18] sm:$0xf]
          %v404 = vld [vmem:[#allocation8 + $0x1c] sm:$0xf]
          %v405 = vld [vmem:[#allocation8 + $0x20] sm:$0xf]
          %v406 = vld [vmem:[#allocation8 + $0x24] sm:$0xf]
          %v407 = vld [vmem:[#allocation8 + $0x28] sm:$0xf]
          %v408 = vld [vmem:[#allocation8 + $0x2c] sm:$0xf]
          %v409 = vld [vmem:[#allocation8 + $0x30] sm:$0xf]
          %v410 = vld [vmem:[#allocation8 + $0x34] sm:$0xf]
          %v411 = vld [vmem:[#allocation8 + $0x38] sm:$0xf]
          %v412 = vld [vmem:[#allocation8 + $0x3c] sm:$0xf]
          %v413 = vld [vmem:[%s4] sm:$0x1]
          %v430 = vunpack.c.l.b16 %v397
          %v431 = vunpack.c.l.b16 %v398
          %v432 = vunpack.c.l.b16 %v399
          %v433 = vunpack.c.l.b16 %v400
          %v434 = vunpack.c.l.b16 %v401
          %v435 = vunpack.c.l.b16 %v402
          %v436 = vunpack.c.l.b16 %v403
          %v437 = vunpack.c.l.b16 %v404
          %v438 = vunpack.c.l.b16 %v405
          %v439 = vunpack.c.l.b16 %v406
          %v440 = vunpack.c.l.b16 %v407
          %v441 = vunpack.c.l.b16 %v408
          %v442 = vunpack.c.l.b16 %v409
          %v443 = vunpack.c.l.b16 %v410
          %v444 = vunpack.c.l.b16 %v411
          %v445 = vunpack.c.l.b16 %v412
          %v446 = vpack.c.b16 %v431, %v430
          %v447 = vpack.c.b16 %v433, %v432
          %v448 = vpack.c.b16 %v435, %v434
          %v449 = vpack.c.b16 %v437, %v436
          %v450 = vpack.c.b16 %v439, %v438
          %v451 = vpack.c.b16 %v441, %v440
          %v452 = vpack.c.b16 %v443, %v442
          %v453 = vpack.c.b16 %v445, %v444
          %462 = vmatprep.subr.bf16.mxu0 0
          %463 = vmatpush1.bf16.msra.mxu0 %v453
          %464 = vmatprep.subr.bf16.mxu0 0
          %465 = vmatpush1.bf16.msra.mxu0 %v452
          %466 = vmatprep.subr.bf16.mxu0 0
          %467 = vmatpush1.bf16.msra.mxu0 %v451
          %468 = vmatprep.subr.bf16.mxu0 0
          %469 = vmatpush1.bf16.msra.mxu0 %v450
          %470 = vmatprep.subr.bf16.mxu0 0
          %471 = vmatpush1.bf16.msra.mxu0 %v449
          %472 = vmatprep.subr.bf16.mxu0 0
          %473 = vmatpush1.bf16.msra.mxu0 %v448
          %474 = vmatprep.subr.bf16.mxu0 0
          %475 = vmatpush1.bf16.msra.mxu0 %v447
          %476 = vmatprep.subr.bf16.mxu0 0
          %477 = vmatpush1.bf16.msra.mxu0 %v446
          %478 = vmatprep.subr.bf16.mxu0 0
          %479 = vmatpush2.bf16.msra.mxu0 0
          %480 = vmatprep.subr.bf16.mxu0 0
          %481 = vmatpush2.bf16.msra.mxu0 0
          %482 = vmatprep.subr.bf16.mxu0 0
          %483 = vmatpush2.bf16.msra.mxu0 0
          %484 = vmatprep.subr.bf16.mxu0 0
          %485 = vmatpush2.bf16.msra.mxu0 0
          %486 = vmatprep.subr.bf16.mxu0 0
          %487 = vmatpush2.bf16.msra.mxu0 0
          %488 = vmatprep.subr.bf16.mxu0 0
          %489 = vmatpush2.bf16.msra.mxu0 0
          %490 = vmatprep.subr.bf16.mxu0 0
          %491 = vmatpush2.bf16.msra.mxu0 0
          %492 = vmatprep.subr.bf16.mxu0 0
          %493 = vmatpush2.bf16.msra.mxu0 0
          %494 = vmatprep.mubr.bf16.mxu0 0
          %495 = vmatmul.mubr.bf16.gmra.mxu0 %v396
          %v496 = vpop.f32.mrf.mxu0
          %v497 = vadd.f32 %v413, %v496
          %v498 = vpop.f32.mrf.mxu0
          %v499 = vpop.f32.mrf.mxu0
          %v500 = vpop.f32.mrf.mxu0
          %501 = vdwg.mxu0
          %502 = vst [vmem:[%s286] sm:$0x1] %v497
        $region60: #{tpu_custom_call.1} parent=39 // pred_fallthru
          _
        %s503 = sand.u32 %s155, 1
        %s504 = scalar_lea.sflag [#allocation5], %s503
        %s505 = sand.u32 %s155, 1
        %s506 = scalar_lea.vmem [#allocation9], %s505
        // Predicated region
        $region61: #{tpu_custom_call.1} parent=39 // pred_check
          %p507 = pneg %p165
        $region62: #{tpu_custom_call.1} parent=39 // pred_check_branch
          %509 = sbr.rel (%p507) target = $region64
        $region63: #{tpu_custom_call.1} parent=39 // pred_region
          %s511 = ssub.s32 16, 16
          %512 = vsyncadd %s504, %s511
          %s513 = smul.addr %s27, 16
          %s514 = scalar_lea.hbm %s5, %s513
          %s516 = sshll.u32 %s506, 4
          %s517 = int_to_ptr.vmem [resolvable:$true] %s516
          %519 = dma.vmem_to_hbm [thread:$0]  %s517, 16, %s514, %s504
        $region64: #{tpu_custom_call.1} parent=39 // pred_fallthru
          _
      $region40: #{tpu_custom_call.1} parent=5 // pred_fallthru
        _
      %p520 = scmp.le.s32.totalorder 2, %s18
      // Predicated region
      $region65: #{tpu_custom_call.1} parent=5 // pred_check
        %p521 = pneg %p520
      $region66: #{tpu_custom_call.1} parent=5 // pred_check_branch
        %523 = sbr.rel (%p521) target = $region68
      $region67: #{tpu_custom_call.1} parent=5 // pred_region
        %s524 = ssub.s32 %s18, 2
        // Predicated region
        $region69: #{tpu_custom_call.1} parent=67 // pred_check
          %p525 = pneg %p171
        $region70: #{tpu_custom_call.1} parent=67 // pred_check_branch
          %527 = sbr.rel (%p525) target = $region72
        $region71: #{tpu_custom_call.1} parent=67 // pred_region
          %s528 = sand.u32 %s156, 1
          %s529 = scalar_lea.sflag [#allocation5], %s528
          %s530 = sand.u32 %s156, 1
          %s531 = scalar_lea.vmem [#allocation9], %s530
          %532 = dma.done %s529, 16
        $region72: #{tpu_custom_call.1} parent=67 // pred_fallthru
          _
      $region68: #{tpu_custom_call.1} parent=5 // pred_fallthru
        _
    $region6: #{tpu_custom_call.1} parent=1 // loop_footer
      %s22 = sadd.s32 1, %s18
    $region7: #{tpu_custom_call.1} parent=1 // loop_footer_branch
      %17 = sbr.rel target = $region3
    $region8: #{tpu_custom_call.1} parent=1 // loop_exit
      _
    %533 = vsyncpa [#allocation4], 1
    %s534 = scalar_lea.sflag [#allocation4], 1
    %535 = vsyncpa %s534, 1
    %536 = vsyncpa [#allocation7], 1
    %537 = vsyncpa [#allocation5], 1
    %s538 = scalar_lea.sflag [#allocation5], 1
    %539 = vsyncpa %s538, 1

</llo_original>
